<compile_context>
chip_gen: v7x
topology: tpu7x:2x2x1
jax: 0.10.0
libtpu: 0.0.40
codegen_flags: <defaults>
</compile_context>

<pallas_src>
import functools

import jax
import jax.numpy as jnp
import numpy as np
from jax.experimental import pallas as pl
from jax.experimental.pallas import tpu as pltpu


def _sparsemax_loss_kernel(z_ref, t_ref, out_ref, loss_ref, *, total_clusters):
    """One (N, L) tile: N neurons on sublanes, L cluster columns on lanes."""
    n, l = z_ref.shape
    i = pl.program_id(0)

    # Mask lanes past the last valid cluster (ragged final tile, no host-side pad).
    lane = jax.lax.broadcasted_iota(jnp.int32, (n, l), 1)
    valid = (i * l + lane) < total_clusters

    z = jnp.where(valid, z_ref[...].astype(jnp.float32), 0.0)
    t = jnp.where(valid, t_ref[...].astype(jnp.float32), 0.0)

    # Sort-free sparsemax support test, per element within each cluster column:
    #   i in support  <=>  1 + |{j: z_j > z_i}| * z_i > sum{z_j : z_j > z_i}
    # which is exactly the sorted test  1 + k*z_(k) > cumsum_k  at k = rank(i)
    # (tie-safe: tied values share the same condition).  Pure VPU work.
    cnt_gt = jnp.zeros((n, l), jnp.float32)
    sum_gt = jnp.zeros((n, l), jnp.float32)
    for j in range(n):                       # static N, fully unrolled
        zj = z[j:j + 1, :]                   # (1, L): row j broadcast over sublanes
        gt = (zj > z).astype(jnp.float32)    # [z_j > z_i] for every i
        cnt_gt += gt
        sum_gt += gt * zj

    is_gt = (1.0 + cnt_gt * z > sum_gt).astype(jnp.float32)   # support indicator
    k = jnp.sum(is_gt, axis=0, keepdims=True)                 # (1, L), always >= 1
    sum_s = jnp.sum(z * is_gt, axis=0, keepdims=True)         # sum over support
    taus = (sum_s - 1.0) / k                                  # (1, L) threshold
    out = jnp.maximum(0.0, z - taus)                          # sparsemax output
    out_ref[...] = out

    # Per-element loss contribution; caller sums everything and divides by B*C.
    #   sum_cluster(zs_sparse^2 - taus^2*is_gt) == sum_i is_gt_i*(z_i^2 - taus^2)
    contrib = -t * z + 0.5 * is_gt * (z * z - taus * taus) + 0.5 * t * t
    loss_ref[0] = jnp.where(valid, contrib, 0.0)


def multilabel_sparsemax_loss(x, target, num_clusters, num_neurons_per_cluster,
                              lane_block=4096):
    """Returns (sparsemax_loss scalar, output_sparsemax (B, C*N)).

    zs_sparse / taus / is_gt are recomputed inside the kernel from `x` (they are
    deterministic functions of it) and never round-trip through HBM.
    """
    B = x.shape[0]
    C, N = num_clusters, num_neurons_per_cluster
    M = B * C

    # Lane-dense layout for the kernel: clusters -> lanes, neurons -> sublanes.
    zT = x.reshape(M, N).astype(jnp.float32).T        # (N, M)
    tT = target.reshape(M, N).astype(jnp.float32).T   # (N, M)

    # Pick the lane tile: either the full cluster axis, or a multiple of 128.
    if lane_block >= M or M <= 128:
        L = M
    else:
        L = max(128, (min(lane_block, M) // 128) * 128)
    G = pl.cdiv(M, L)

    kernel = functools.partial(_sparsemax_loss_kernel, total_clusters=M)
    io_spec = pl.BlockSpec((N, L), lambda i: (0, i))

    out_T, loss_parts = pl.pallas_call(
        kernel,
        grid=(G,),
        in_specs=[io_spec, io_spec],
        out_specs=[
            io_spec,                                         # output_sparsemax (N, M)
            pl.BlockSpec((1, N, L), lambda i: (i, 0, 0)),    # per-tile loss slab
        ],
        out_shape=(
            jax.ShapeDtypeStruct((N, M), jnp.float32),
            jax.ShapeDtypeStruct((G, N, L), jnp.float32),
        ),
        compiler_params=pltpu.CompilerParams(dimension_semantics=("parallel",)),
    )(zT, tT)

    sparsemax_loss = jnp.sum(loss_parts) / (B * C)
    output_sparsemax = out_T.T.reshape(B, C * N)
    return sparsemax_loss, output_sparsemax


def reference_loss(x, target, C, N):
    """Pure-JAX reference mirroring the PyTorch sparsemax + MultiLabelSparseMaxLoss."""
    B = x.shape[0]
    z = x.reshape(B, C, N).astype(jnp.float32)
    t = target.reshape(B, C, N).astype(jnp.float32)
    zs = -jnp.sort(-z, axis=-1)
    rng = jnp.arange(1, N + 1, dtype=jnp.float32)
    bound = 1.0 + rng * zs
    cs = jnp.cumsum(zs, axis=-1)
    is_gt = (bound > cs).astype(jnp.float32)
    k = jnp.max(rng * is_gt, axis=-1)
    zs_sparse = is_gt * zs
    taus = (jnp.sum(zs_sparse, axis=-1) - 1.0) / k
    out = jnp.maximum(0.0, z - taus[..., None])
    tz = jnp.sum(t * z, axis=-1)
    tt = jnp.sum(t * t, axis=-1)
    sum_input_taus = jnp.sum(zs_sparse ** 2 - (taus[..., None] ** 2) * is_gt, axis=-1)
    loss = jnp.sum(-tz + 0.5 * sum_input_taus + 0.5 * tt) / (B * C)
    return loss, out.reshape(B, C * N)


if __name__ == "__main__":
    B, num_clusters, num_neurons_per_cluster = 22, 16, 8   # M = 352 cluster rows

    key = jax.random.PRNGKey(0)
    kx, kt = jax.random.split(key)
    x = jax.random.normal(
        kx, (B, num_clusters * num_neurons_per_cluster), dtype=jnp.float32)
    target = (jax.random.uniform(
        kt, (B, num_clusters * num_neurons_per_cluster)) < 0.3).astype(jnp.float32)

    # Small lane_block so the test exercises multiple grid steps + the ragged tail.
    fwd = jax.jit(functools.partial(
        multilabel_sparsemax_loss,
        num_clusters=num_clusters,
        num_neurons_per_cluster=num_neurons_per_cluster,
        lane_block=128))
    loss, out = jax.block_until_ready(fwd(x, target))

    r_loss, r_out = reference_loss(x, target, num_clusters, num_neurons_per_cluster)
    assert np.allclose(np.asarray(out), np.asarray(r_out), atol=1e-5)
    assert np.allclose(np.asarray(loss), np.asarray(r_loss), rtol=1e-4, atol=1e-5)
    # sparsemax outputs per cluster must sum to 1
    assert np.allclose(
        np.asarray(out).reshape(B, num_clusters, num_neurons_per_cluster).sum(-1),
        1.0, atol=1e-5)

    print("KERNEL_OK")
</pallas_src>

<mosaic_0001>
module attributes {stable_mosaic.version = 11 : i64} {
  func.func @_sparsemax_loss_kernel(%arg0: i32, %arg1: memref<8x128xf32, #tpu.memory_space<vmem>>, %arg2: memref<8x128xf32, #tpu.memory_space<vmem>>, %arg3: memref<8x128xf32, #tpu.memory_space<vmem>>, %arg4: memref<1x8x128xf32, #tpu.memory_space<vmem>>) attributes {dimension_semantics = [#tpu.dimension_semantics<parallel>], iteration_bounds = array<i64: 3>, scalar_prefetch = 0 : i64, scratch_operands = 0 : i64, tpu.core_type = #tpu.core_type<tc>, window_params = [{transform_indices = @transform_0, window_bounds = array<i64: 8, 128>}, {transform_indices = @transform_1, window_bounds = array<i64: 8, 128>}, {transform_indices = @transform_2, window_bounds = array<i64: 8, 128>}, {transform_indices = @transform_3, window_bounds = array<i64: 1, 8, 128>}]} {
    %0 = tpu.iota {dimensions = array<i32: 1>} : vector<8x128xi32>
    %c128_i32 = arith.constant 128 : i32
    %1 = arith.muli %arg0, %c128_i32 : i32
    %2 = vector.broadcast %1 : i32 to vector<8x128xi32>
    %3 = arith.addi %2, %0 : vector<8x128xi32>
    %c352_i32 = arith.constant 352 : i32
    %4 = vector.broadcast %c352_i32 : i32 to vector<8x128xi32>
    %5 = arith.cmpi slt, %3, %4 : vector<8x128xi32>
    %c0 = arith.constant 0 : index
    %c0_0 = arith.constant 0 : index
    %6 = vector.load %arg1[%c0, %c0_0] : memref<8x128xf32, #tpu.memory_space<vmem>>, vector<8x128xf32>
    %cst = arith.constant 0.000000e+00 : f32
    %7 = vector.broadcast %cst : f32 to vector<8x128xf32>
    %8 = arith.select %5, %6, %7 : vector<8x128xi1>, vector<8x128xf32>
    %c0_1 = arith.constant 0 : index
    %c0_2 = arith.constant 0 : index
    %9 = vector.load %arg2[%c0_1, %c0_2] : memref<8x128xf32, #tpu.memory_space<vmem>>, vector<8x128xf32>
    %cst_3 = arith.constant 0.000000e+00 : f32
    %10 = vector.broadcast %cst_3 : f32 to vector<8x128xf32>
    %11 = arith.select %5, %9, %10 : vector<8x128xi1>, vector<8x128xf32>
    %cst_4 = arith.constant 0.000000e+00 : f32
    %12 = vector.broadcast %cst_4 : f32 to vector<8x128xf32>
    %cst_5 = arith.constant 0.000000e+00 : f32
    %13 = vector.broadcast %cst_5 : f32 to vector<8x128xf32>
    %14 = vector.extract_strided_slice %8 {offsets = [0, 0], sizes = [1, 128], strides = [1, 1]} : vector<8x128xf32> to vector<1x128xf32>
    %15 = vector.broadcast %14 : vector<1x128xf32> to vector<8x128xf32>
    %16 = arith.cmpf ogt, %15, %8 : vector<8x128xf32>
    %17 = arith.extui %16 : vector<8x128xi1> to vector<8x128xi32>
    %18 = arith.sitofp %17 : vector<8x128xi32> to vector<8x128xf32>
    %19 = arith.addf %12, %18 : vector<8x128xf32>
    %20 = vector.broadcast %14 : vector<1x128xf32> to vector<8x128xf32>
    %21 = arith.mulf %18, %20 : vector<8x128xf32>
    %22 = arith.addf %13, %21 : vector<8x128xf32>
    %23 = vector.extract_strided_slice %8 {offsets = [1, 0], sizes = [1, 128], strides = [1, 1]} : vector<8x128xf32> to vector<1x128xf32>
    %24 = vector.broadcast %23 : vector<1x128xf32> to vector<8x128xf32>
    %25 = arith.cmpf ogt, %24, %8 : vector<8x128xf32>
    %26 = arith.extui %25 : vector<8x128xi1> to vector<8x128xi32>
    %27 = arith.sitofp %26 : vector<8x128xi32> to vector<8x128xf32>
    %28 = arith.addf %19, %27 : vector<8x128xf32>
    %29 = vector.broadcast %23 : vector<1x128xf32> to vector<8x128xf32>
    %30 = arith.mulf %27, %29 : vector<8x128xf32>
    %31 = arith.addf %22, %30 : vector<8x128xf32>
    %32 = vector.extract_strided_slice %8 {offsets = [2, 0], sizes = [1, 128], strides = [1, 1]} : vector<8x128xf32> to vector<1x128xf32>
    %33 = vector.broadcast %32 : vector<1x128xf32> to vector<8x128xf32>
    %34 = arith.cmpf ogt, %33, %8 : vector<8x128xf32>
    %35 = arith.extui %34 : vector<8x128xi1> to vector<8x128xi32>
    %36 = arith.sitofp %35 : vector<8x128xi32> to vector<8x128xf32>
    %37 = arith.addf %28, %36 : vector<8x128xf32>
    %38 = vector.broadcast %32 : vector<1x128xf32> to vector<8x128xf32>
    %39 = arith.mulf %36, %38 : vector<8x128xf32>
    %40 = arith.addf %31, %39 : vector<8x128xf32>
    %41 = vector.extract_strided_slice %8 {offsets = [3, 0], sizes = [1, 128], strides = [1, 1]} : vector<8x128xf32> to vector<1x128xf32>
    %42 = vector.broadcast %41 : vector<1x128xf32> to vector<8x128xf32>
    %43 = arith.cmpf ogt, %42, %8 : vector<8x128xf32>
    %44 = arith.extui %43 : vector<8x128xi1> to vector<8x128xi32>
    %45 = arith.sitofp %44 : vector<8x128xi32> to vector<8x128xf32>
    %46 = arith.addf %37, %45 : vector<8x128xf32>
    %47 = vector.broadcast %41 : vector<1x128xf32> to vector<8x128xf32>
    %48 = arith.mulf %45, %47 : vector<8x128xf32>
    %49 = arith.addf %40, %48 : vector<8x128xf32>
    %50 = vector.extract_strided_slice %8 {offsets = [4, 0], sizes = [1, 128], strides = [1, 1]} : vector<8x128xf32> to vector<1x128xf32>
    %51 = vector.broadcast %50 : vector<1x128xf32> to vector<8x128xf32>
    %52 = arith.cmpf ogt, %51, %8 : vector<8x128xf32>
    %53 = arith.extui %52 : vector<8x128xi1> to vector<8x128xi32>
    %54 = arith.sitofp %53 : vector<8x128xi32> to vector<8x128xf32>
    %55 = arith.addf %46, %54 : vector<8x128xf32>
    %56 = vector.broadcast %50 : vector<1x128xf32> to vector<8x128xf32>
    %57 = arith.mulf %54, %56 : vector<8x128xf32>
    %58 = arith.addf %49, %57 : vector<8x128xf32>
    %59 = vector.extract_strided_slice %8 {offsets = [5, 0], sizes = [1, 128], strides = [1, 1]} : vector<8x128xf32> to vector<1x128xf32>
    %60 = vector.broadcast %59 : vector<1x128xf32> to vector<8x128xf32>
    %61 = arith.cmpf ogt, %60, %8 : vector<8x128xf32>
    %62 = arith.extui %61 : vector<8x128xi1> to vector<8x128xi32>
    %63 = arith.sitofp %62 : vector<8x128xi32> to vector<8x128xf32>
    %64 = arith.addf %55, %63 : vector<8x128xf32>
    %65 = vector.broadcast %59 : vector<1x128xf32> to vector<8x128xf32>
    %66 = arith.mulf %63, %65 : vector<8x128xf32>
    %67 = arith.addf %58, %66 : vector<8x128xf32>
    %68 = vector.extract_strided_slice %8 {offsets = [6, 0], sizes = [1, 128], strides = [1, 1]} : vector<8x128xf32> to vector<1x128xf32>
    %69 = vector.broadcast %68 : vector<1x128xf32> to vector<8x128xf32>
    %70 = arith.cmpf ogt, %69, %8 : vector<8x128xf32>
    %71 = arith.extui %70 : vector<8x128xi1> to vector<8x128xi32>
    %72 = arith.sitofp %71 : vector<8x128xi32> to vector<8x128xf32>
    %73 = arith.addf %64, %72 : vector<8x128xf32>
    %74 = vector.broadcast %68 : vector<1x128xf32> to vector<8x128xf32>
    %75 = arith.mulf %72, %74 : vector<8x128xf32>
    %76 = arith.addf %67, %75 : vector<8x128xf32>
    %77 = vector.extract_strided_slice %8 {offsets = [7, 0], sizes = [1, 128], strides = [1, 1]} : vector<8x128xf32> to vector<1x128xf32>
    %78 = vector.broadcast %77 : vector<1x128xf32> to vector<8x128xf32>
    %79 = arith.cmpf ogt, %78, %8 : vector<8x128xf32>
    %80 = arith.extui %79 : vector<8x128xi1> to vector<8x128xi32>
    %81 = arith.sitofp %80 : vector<8x128xi32> to vector<8x128xf32>
    %82 = arith.addf %73, %81 : vector<8x128xf32>
    %83 = vector.broadcast %77 : vector<1x128xf32> to vector<8x128xf32>
    %84 = arith.mulf %81, %83 : vector<8x128xf32>
    %85 = arith.addf %76, %84 : vector<8x128xf32>
    %86 = arith.mulf %82, %8 : vector<8x128xf32>
    %cst_6 = arith.constant 1.000000e+00 : f32
    %87 = vector.broadcast %cst_6 : f32 to vector<8x128xf32>
    %88 = arith.addf %87, %86 : vector<8x128xf32>
    %89 = arith.cmpf ogt, %88, %85 : vector<8x128xf32>
    %90 = arith.extui %89 : vector<8x128xi1> to vector<8x128xi32>
    %91 = arith.sitofp %90 : vector<8x128xi32> to vector<8x128xf32>
    %cst_7 = arith.constant dense<0.000000e+00> : vector<128xf32>
    %92 = vector.multi_reduction <add>, %91, %cst_7 [0] : vector<8x128xf32> to vector<128xf32>
    %93 = vector.shape_cast %92 : vector<128xf32> to vector<1x128xf32>
    %94 = arith.mulf %8, %91 : vector<8x128xf32>
    %cst_8 = arith.constant dense<0.000000e+00> : vector<128xf32>
    %95 = vector.multi_reduction <add>, %94, %cst_8 [0] : vector<8x128xf32> to vector<128xf32>
    %96 = vector.shape_cast %95 : vector<128xf32> to vector<1x128xf32>
    %cst_9 = arith.constant 1.000000e+00 : f32
    %97 = vector.broadcast %cst_9 : f32 to vector<1x128xf32>
    %98 = arith.subf %96, %97 : vector<1x128xf32>
    %99 = arith.divf %98, %93 : vector<1x128xf32>
    %100 = vector.broadcast %99 : vector<1x128xf32> to vector<8x128xf32>
    %101 = arith.subf %8, %100 : vector<8x128xf32>
    %cst_10 = arith.constant 0.000000e+00 : f32
    %102 = vector.broadcast %cst_10 : f32 to vector<8x128xf32>
    %103 = arith.maximumf %102, %101 : vector<8x128xf32>
    %c0_11 = arith.constant 0 : index
    %c0_12 = arith.constant 0 : index
    %104 = vector.load %arg3[%c0_11, %c0_12] : memref<8x128xf32, #tpu.memory_space<vmem>>, vector<8x128xf32>
    tpu.vector_store %arg3[%c0_11, %c0_12], %103 {strides = array<i32>} : memref<8x128xf32, #tpu.memory_space<vmem>>, vector<8x128xf32>,
    %cst_13 = arith.constant 0.000000e+00 : f32
    %105 = vector.broadcast %cst_13 : f32 to vector<8x128xf32>
    %106 = arith.subf %105, %11 : vector<8x128xf32>
    %107 = arith.mulf %106, %8 : vector<8x128xf32>
    %cst_14 = arith.constant 5.000000e-01 : f32
    %108 = vector.broadcast %cst_14 : f32 to vector<8x128xf32>
    %109 = arith.mulf %108, %91 : vector<8x128xf32>
    %110 = arith.mulf %8, %8 : vector<8x128xf32>
    %111 = arith.mulf %99, %99 : vector<1x128xf32>
    %112 = vector.broadcast %111 : vector<1x128xf32> to vector<8x128xf32>
    %113 = arith.subf %110, %112 : vector<8x128xf32>
    %114 = arith.mulf %109, %113 : vector<8x128xf32>
    %115 = arith.addf %107, %114 : vector<8x128xf32>
    %cst_15 = arith.constant 5.000000e-01 : f32
    %116 = vector.broadcast %cst_15 : f32 to vector<8x128xf32>
    %117 = arith.mulf %116, %11 : vector<8x128xf32>
    %118 = arith.mulf %117, %11 : vector<8x128xf32>
    %119 = arith.addf %115, %118 : vector<8x128xf32>
    %cst_16 = arith.constant 0.000000e+00 : f32
    %120 = vector.broadcast %cst_16 : f32 to vector<8x128xf32>
    %121 = arith.select %5, %119, %120 : vector<8x128xi1>, vector<8x128xf32>
    %c0_17 = arith.constant 0 : index
    %c0_18 = arith.constant 0 : index
    %c0_19 = arith.constant 0 : index
    %122 = vector.load %arg4[%c0_17, %c0_18, %c0_19] : memref<1x8x128xf32, #tpu.memory_space<vmem>>, vector<1x8x128xf32>
    %123 = vector.shape_cast %122 : vector<1x8x128xf32> to vector<8x128xf32>
    %124 = vector.shape_cast %121 : vector<8x128xf32> to vector<1x8x128xf32>
    tpu.vector_store %arg4[%c0_17, %c0_18, %c0_19], %124 {strides = array<i32>} : memref<1x8x128xf32, #tpu.memory_space<vmem>>, vector<1x8x128xf32>,
    return
  }
  func.func @transform_0(%arg0: i32) -> (i32, i32) {
    %c0_i32 = arith.constant 0 : i32
    %c0_i32_0 = arith.constant 0 : i32
    return %c0_i32, %arg0 : i32, i32
  }
  func.func @transform_1(%arg0: i32) -> (i32, i32) {
    %c0_i32 = arith.constant 0 : i32
    %c0_i32_0 = arith.constant 0 : i32
    return %c0_i32, %arg0 : i32, i32
  }
  func.func @transform_2(%arg0: i32) -> (i32, i32) {
    %c0_i32 = arith.constant 0 : i32
    %c0_i32_0 = arith.constant 0 : i32
    return %c0_i32, %arg0 : i32, i32
  }
  func.func @transform_3(%arg0: i32) -> (i32, i32, i32) {
    %c0_i32 = arith.constant 0 : i32
    %c0_i32_0 = arith.constant 0 : i32
    %c0_i32_1 = arith.constant 0 : i32
    return %arg0, %c0_i32, %c0_i32_0 : i32, i32, i32
  }
}

</mosaic_0001>

<llo_original>
// kernel: multilabel_sparsemax_loss.1
$region0: #{multilabel_sparsemax_loss.1}
  #allocation0 [shape = 'u32[]', space=smem, size = 0x4, offset = 0x4, fixed_abs, tag = 'smem constant byte address 0x4 - core index']
  #allocation1 [shape = 'u32[144,128]{1,0:T(1,128)}', space=vmem, size = 0x12000, scoped, tag = 'internal scratch']
  %s0 = inlined_call_operand.vmem [shape: f32[8,352], index: 0, kind: input, shape index: {}]
  %s1 = inlined_call_operand.vmem [shape: f32[8,352], index: 1, kind: input, shape index: {}]
  %s2 = inlined_call_operand.vmem [shape: f32[8,352], index: 2, kind: output, shape index: {0}]
  %s3 = inlined_call_operand.vmem [shape: f32[3,8,128], index: 3, kind: output, shape index: {1}]
  %4 = xla_tuple %s2, %s3
  %s5 = sld [smem:[#allocation0]]
  $region49: #{multilabel_sparsemax_loss.1} parent=0
    _
  %s7 = ssub.s32 1, %s5
  %s8 = scalar_select 0, %s7, %s5
  loop: start=0, step=1, limit=5
  $region2: #{multilabel_sparsemax_loss.1} parent=0 // loop_pre_header
    _
  $region3: #{multilabel_sparsemax_loss.1} parent=0 // loop_header
    %s10 = sphi 0, %s14
    %p11 = scmp.ge.s32.totalorder %s10, 5
    %s20 = sphi 0, %s22
    %s23 = sphi 0, %s20
    %s24 = sphi 0, %s23
    %s40 = sphi 0, %s24
    %s46 = sphi 0, %s48
    %s49 = sphi 0, %s46
    %s50 = sphi 0, %s49
    %s66 = sphi 0, %s50
    %s72 = sphi 0, %s74
    %s75 = sphi 0, %s72
    %s76 = sphi 0, %s75
    %s92 = sphi 0, %s76
    %s98 = sphi 0, %s100
    %s101 = sphi 0, %s98
    %s102 = sphi 0, %s101
    %s118 = sphi 0, %s102
  $region4: #{multilabel_sparsemax_loss.1} parent=0 // loop_header_branch
    %13 = sbr.rel (%p11) target = $region8
  $region5: #{multilabel_sparsemax_loss.1} parent=0 // loop_body
    %s15 = ssub.s32 %s10, 1
    %s16 = ssub.s32 %s10, 2
    %s17 = sadd.s32 %s10, 1
    %s18 = ssub.s32 %s10, %s17
    %p19 = scmp.eq.s32.totalorder %s18, 0
    %s21 = sadd.s32 %s20, 1
    %s22 = scalar_select %p19, %s20, %s21
    %p25 = pneg %p19
    %p26 = scmp.eq.s32.totalorder %s10, 2
    %p27 = por %p25, %p26
    %p28 = scmp.ne.s32.totalorder %s20, %s23
    %p29 = scmp.eq.s32.totalorder %s10, 0
    %p30 = por %p28, %p29
    %p31 = scmp.ne.s32.totalorder %s20, %s23
    %p32 = scmp.eq.s32.totalorder %s15, 2
    %p33 = por %p31, %p32
    %p34 = scmp.ne.s32.totalorder %s23, %s24
    %p35 = scmp.eq.s32.totalorder %s15, 0
    %p36 = por %p34, %p35
    %p37 = scmp.ne.s32.totalorder %s23, %s24
    %p38 = scmp.eq.s32.totalorder %s16, 2
    %p39 = por %p37, %p38
    %p41 = scmp.ne.s32.totalorder %s24, %s40
    %p42 = scmp.eq.s32.totalorder %s16, 0
    %p43 = por %p41, %p42
    %s44 = ssub.s32 %s10, %s17
    %p45 = scmp.eq.s32.totalorder %s44, 0
    %s47 = sadd.s32 %s46, 1
    %s48 = scalar_select %p45, %s46, %s47
    %p51 = pneg %p45
    %p52 = scmp.eq.s32.totalorder %s10, 2
    %p53 = por %p51, %p52
    %p54 = scmp.ne.s32.totalorder %s46, %s49
    %p55 = scmp.eq.s32.totalorder %s10, 0
    %p56 = por %p54, %p55
    %p57 = scmp.ne.s32.totalorder %s46, %s49
    %p58 = scmp.eq.s32.totalorder %s15, 2
    %p59 = por %p57, %p58
    %p60 = scmp.ne.s32.totalorder %s49, %s50
    %p61 = scmp.eq.s32.totalorder %s15, 0
    %p62 = por %p60, %p61
    %p63 = scmp.ne.s32.totalorder %s49, %s50
    %p64 = scmp.eq.s32.totalorder %s16, 2
    %p65 = por %p63, %p64
    %p67 = scmp.ne.s32.totalorder %s50, %s66
    %p68 = scmp.eq.s32.totalorder %s16, 0
    %p69 = por %p67, %p68
    %s70 = ssub.s32 %s10, %s17
    %p71 = scmp.eq.s32.totalorder %s70, 0
    %s73 = sadd.s32 %s72, 1
    %s74 = scalar_select %p71, %s72, %s73
    %p77 = pneg %p71
    %p78 = scmp.eq.s32.totalorder %s10, 2
    %p79 = por %p77, %p78
    %p80 = scmp.ne.s32.totalorder %s72, %s75
    %p81 = scmp.eq.s32.totalorder %s10, 0
    %p82 = por %p80, %p81
    %p83 = scmp.ne.s32.totalorder %s72, %s75
    %p84 = scmp.eq.s32.totalorder %s15, 2
    %p85 = por %p83, %p84
    %p86 = scmp.ne.s32.totalorder %s75, %s76
    %p87 = scmp.eq.s32.totalorder %s15, 0
    %p88 = por %p86, %p87
    %p89 = scmp.ne.s32.totalorder %s75, %s76
    %p90 = scmp.eq.s32.totalorder %s16, 2
    %p91 = por %p89, %p90
    %p93 = scmp.ne.s32.totalorder %s76, %s92
    %p94 = scmp.eq.s32.totalorder %s16, 0
    %p95 = por %p93, %p94
    %s96 = ssub.s32 %s10, %s17
    %p97 = scmp.eq.s32.totalorder %s96, 0
    %s99 = sadd.s32 %s98, 1
    %s100 = scalar_select %p97, %s98, %s99
    %p103 = pneg %p97
    %p104 = scmp.eq.s32.totalorder %s10, 2
    %p105 = por %p103, %p104
    %p106 = scmp.ne.s32.totalorder %s98, %s101
    %p107 = scmp.eq.s32.totalorder %s10, 0
    %p108 = por %p106, %p107
    %p109 = scmp.ne.s32.totalorder %s98, %s101
    %p110 = scmp.eq.s32.totalorder %s15, 2
    %p111 = por %p109, %p110
    %p112 = scmp.ne.s32.totalorder %s101, %s102
    %p113 = scmp.eq.s32.totalorder %s15, 0
    %p114 = por %p112, %p113
    %p115 = scmp.ne.s32.totalorder %s101, %s102
    %p116 = scmp.eq.s32.totalorder %s16, 2
    %p117 = por %p115, %p116
    %p119 = scmp.ne.s32.totalorder %s102, %s118
    %p120 = scmp.eq.s32.totalorder %s16, 0
    %p121 = por %p119, %p120
    %p122 = scmp.le.s32.totalorder 1, %s10
    %p123 = scmp.lt.s32.totalorder %s10, 4
    %p124 = pnand %p122, %p123
    %p125 = pneg %p124
    // Predicated region
    $region9: #{multilabel_sparsemax_loss.1} parent=5 // pred_check
      _
    $region10: #{multilabel_sparsemax_loss.1} parent=5 // pred_check_branch
      %127 = sbr.rel (%p124) target = $region12
    $region11: #{multilabel_sparsemax_loss.1} parent=5 // pred_region
      %s128 = ssub.s32 %s10, 1
    $region12: #{multilabel_sparsemax_loss.1} parent=5 // pred_fallthru
      _
    %p129 = scmp.lt.s32.totalorder %s10, 3
    // Predicated region
    $region13: #{multilabel_sparsemax_loss.1} parent=5 // pred_check
      %p130 = pneg %p129
    $region14: #{multilabel_sparsemax_loss.1} parent=5 // pred_check_branch
      %132 = sbr.rel (%p130) target = $region16
    $region15: #{multilabel_sparsemax_loss.1} parent=5 // pred_region
      // Predicated region
      $region17: #{multilabel_sparsemax_loss.1} parent=15 // pred_check
        %p133 = pneg %p30
      $region18: #{multilabel_sparsemax_loss.1} parent=15 // pred_check_branch
        %135 = sbr.rel (%p133) target = $region20
      $region19: #{multilabel_sparsemax_loss.1} parent=15 // pred_region
        %p136 = scmp.lt.s32.totalorder %s10, 2
        %s137 = scalar_select %p136, %s10, 2
        %s138 = smul.addr %s137, 8
        %s139 = scalar_lea.vmem %s0, %s138
      $region20: #{multilabel_sparsemax_loss.1} parent=15 // pred_fallthru
        _
      // Predicated region
      $region21: #{multilabel_sparsemax_loss.1} parent=15 // pred_check
        %p140 = pneg %p56
      $region22: #{multilabel_sparsemax_loss.1} parent=15 // pred_check_branch
        %142 = sbr.rel (%p140) target = $region24
      $region23: #{multilabel_sparsemax_loss.1} parent=15 // pred_region
        %p143 = scmp.lt.s32.totalorder %s10, 2
        %s144 = scalar_select %p143, %s10, 2
        %s145 = smul.addr %s144, 8
        %s146 = scalar_lea.vmem %s1, %s145
      $region24: #{multilabel_sparsemax_loss.1} parent=15 // pred_fallthru
        _
    $region16: #{multilabel_sparsemax_loss.1} parent=5 // pred_fallthru
      _
    %p147 = scmp.le.s32.totalorder 1, %s10
    %p148 = scmp.lt.s32.totalorder %s10, 4
    %p149 = pnand %p147, %p148
    %p150 = pneg %p149
    // Predicated region
    $region25: #{multilabel_sparsemax_loss.1} parent=5 // pred_check
      _
    $region26: #{multilabel_sparsemax_loss.1} parent=5 // pred_check_branch
      %152 = sbr.rel (%p149) target = $region28
    $region27: #{multilabel_sparsemax_loss.1} parent=5 // pred_region
      %s153 = ssub.s32 %s10, 1
      %p154 = scmp.lt.s32.totalorder %s15, 2
      %s155 = scalar_select %p154, %s15, 2
      %s156 = smul.addr %s155, 8
      %s157 = scalar_lea.vmem %s0, %s156
      %p158 = pneg %p36
      %p159 = pneg %p33
      %p160 = scmp.lt.s32.totalorder %s15, 2
      %s161 = scalar_select %p160, %s15, 2
      %s162 = smul.addr %s161, 8
      %s163 = scalar_lea.vmem %s1, %s162
      %p164 = pneg %p62
      %p165 = pneg %p59
      %p166 = pneg %p88
      %p167 = pneg %p85
      %p168 = scmp.lt.s32.totalorder %s15, 2
      %s169 = scalar_select %p168, %s15, 2
      %s170 = smul.addr %s169, 8
      %s171 = scalar_lea.vmem %s2, %s170
      %p172 = pneg %p114
      %p173 = pneg %p111
      %p174 = scmp.lt.s32.totalorder %s15, 2
      %s175 = scalar_select %p174, %s15, 2
      %s176 = smul.addr %s175, 8
      %s177 = scalar_lea.vmem %s3, %s176
      %p178 = scmp.lt.s32.totalorder %s15, 2
      %s179 = scalar_select %p178, %s15, 2
      %s180 = smul.addr %s179, 8
      %s181 = scalar_lea.vmem %s0, %s180
      %p182 = scmp.lt.s32.totalorder %s15, 2
      %s183 = scalar_select %p182, %s15, 2
      %s184 = smul.addr %s183, 8
      %s185 = scalar_lea.vmem %s1, %s184
      %p186 = scmp.lt.s32.totalorder %s15, 2
      %s187 = scalar_select %p186, %s15, 2
      %s188 = smul.addr %s187, 8
      %s189 = scalar_lea.vmem %s2, %s188
      %p190 = scmp.lt.s32.totalorder %s15, 2
      %s191 = scalar_select %p190, %s15, 2
      %s192 = smul.addr %s191, 8
      %s193 = scalar_lea.vmem %s3, %s192
      %v194 = vlaneseq
      %v195 = vand.u32 %v194, 127
      %s196 = smul.u32 %s15, 128
      %v197 = vstv %s196
      %v198 = vadd.s32 %v197, %v195
      %vm199 = vcmp.lt.s32.totalorder %v198, 352
      %v200 = vld [vmem:[%s181] sm:$0xff]
      %v201 = vsel %vm199, %v200, 0.0
      %v202 = vld [vmem:[%s185] sm:$0xff]
      %v203 = vsel %vm199, %v202, 0.0
      %v204 = vlaneseq
      %v205 = vshrl.u32 %v204, 7
      %v206 = vsub.s32 0, %v205
      %v207 = vrot.slane %v201, %v206
      %vm208 = vcmp.gt.f32.partialorder %v207, %v201
      %v209 = vsel %vm208, 1, 0
      %v210 = vcvt.s32.f32 %v209
      %v211 = vadd.f32 %v210, 0.0
      %v212 = vmul.f32 %v210, %v207
      %v213 = vadd.f32 %v212, 0.0
      %v214 = vlaneseq
      %v215 = vshrl.u32 %v214, 7
      %v216 = vsub.s32 1, %v215
      %v217 = vrot.slane %v201, %v216
      %vm218 = vcmp.gt.f32.partialorder %v217, %v201
      %v219 = vsel %vm218, 1, 0
      %v220 = vcvt.s32.f32 %v219
      %v221 = vadd.f32 %v211, %v220
      %v222 = vmul.f32 %v220, %v217
      %v223 = vadd.f32 %v213, %v222
      %v224 = vlaneseq
      %v225 = vshrl.u32 %v224, 7
      %v226 = vsub.s32 2, %v225
      %v227 = vrot.slane %v201, %v226
      %vm228 = vcmp.gt.f32.partialorder %v227, %v201
      %v229 = vsel %vm228, 1, 0
      %v230 = vcvt.s32.f32 %v229
      %v231 = vadd.f32 %v221, %v230
      %v232 = vmul.f32 %v230, %v227
      %v233 = vadd.f32 %v223, %v232
      %v234 = vlaneseq
      %v235 = vshrl.u32 %v234, 7
      %v236 = vsub.s32 3, %v235
      %v237 = vrot.slane %v201, %v236
      %vm238 = vcmp.gt.f32.partialorder %v237, %v201
      %v239 = vsel %vm238, 1, 0
      %v240 = vcvt.s32.f32 %v239
      %v241 = vadd.f32 %v231, %v240
      %v242 = vmul.f32 %v240, %v237
      %v243 = vadd.f32 %v233, %v242
      %v244 = vlaneseq
      %v245 = vshrl.u32 %v244, 7
      %v246 = vsub.s32 4, %v245
      %v247 = vrot.slane %v201, %v246
      %vm248 = vcmp.gt.f32.partialorder %v247, %v201
      %v249 = vsel %vm248, 1, 0
      %v250 = vcvt.s32.f32 %v249
      %v251 = vadd.f32 %v241, %v250
      %v252 = vmul.f32 %v250, %v247
      %v253 = vadd.f32 %v243, %v252
      %v254 = vlaneseq
      %v255 = vshrl.u32 %v254, 7
      %v256 = vsub.s32 5, %v255
      %v257 = vrot.slane %v201, %v256
      %vm258 = vcmp.gt.f32.partialorder %v257, %v201
      %v259 = vsel %vm258, 1, 0
      %v260 = vcvt.s32.f32 %v259
      %v261 = vadd.f32 %v251, %v260
      %v262 = vmul.f32 %v260, %v257
      %v263 = vadd.f32 %v253, %v262
      %v264 = vlaneseq
      %v265 = vshrl.u32 %v264, 7
      %v266 = vsub.s32 6, %v265
      %v267 = vrot.slane %v201, %v266
      %vm268 = vcmp.gt.f32.partialorder %v267, %v201
      %v269 = vsel %vm268, 1, 0
      %v270 = vcvt.s32.f32 %v269
      %v271 = vadd.f32 %v261, %v270
      %v272 = vmul.f32 %v270, %v267
      %v273 = vadd.f32 %v263, %v272
      %v274 = vlaneseq
      %v275 = vshrl.u32 %v274, 7
      %v276 = vsub.s32 7, %v275
      %v277 = vrot.slane %v201, %v276
      %vm278 = vcmp.gt.f32.partialorder %v277, %v201
      %v279 = vsel %vm278, 1, 0
      %v280 = vcvt.s32.f32 %v279
      %v281 = vadd.f32 %v271, %v280
      %v282 = vmul.f32 %v280, %v277
      %v283 = vadd.f32 %v273, %v282
      %v284 = vmul.f32 %v281, %v201
      %v285 = vadd.f32 %v284, 1.0
      %vm286 = vcmp.gt.f32.partialorder %v285, %v283
      %v287 = vsel %vm286, 1, 0
      %v288 = vcvt.s32.f32 %v287
      %v289 = vrot.slane %v288, 4
      %v290 = vadd.f32 %v288, %v289
      %v291 = vrot.slane %v290, 2
      %v292 = vadd.f32 %v290, %v291
      %v293 = vrot.slane %v292, 1
      %v294 = vadd.f32 %v292, %v293
      %v295 = vmul.f32 %v201, %v288
      %v296 = vrot.slane %v295, 4
      %v297 = vadd.f32 %v295, %v296
      %v298 = vrot.slane %v297, 2
      %v299 = vadd.f32 %v297, %v298
      %v300 = vrot.slane %v299, 1
      %v301 = vadd.f32 %v299, %v300
      %v302 = vsub.f32 %v301, 1.0
      %v303 = vrcp.pop %v294
      %v304 = vmul.f32 %v302, %v303
      %v305 = vsub.f32 %v201, %v304
      %v306 = vmax.f32 %v305, 0.0
      %307 = vst [vmem:[%s189] sm:$0xff] %v306
      %v308 = vsub.f32 0.0, %v203
      %v309 = vmul.f32 %v308, %v201
      %v310 = vmul.f32 %v288, 0.5
      %v311 = vmul.f32 %v201, %v201
      %v312 = vmul.f32 %v304, %v304
      %v313 = vsub.f32 %v311, %v312
      %v314 = vmul.f32 %v310, %v313
      %v315 = vadd.f32 %v309, %v314
      %v316 = vmul.f32 %v203, 0.5
      %v317 = vmul.f32 %v316, %v203
      %v318 = vadd.f32 %v315, %v317
      %v319 = vsel %vm199, %v318, 0.0
      %320 = vst [vmem:[%s193] sm:$0xff] %v319
      %p321 = scmp.lt.s32.totalorder %s15, 2
      %s322 = scalar_select %p321, %s15, 2
      %s323 = smul.addr %s322, 8
      %s324 = scalar_lea.vmem %s2, %s323
      %p325 = scmp.lt.s32.totalorder %s15, 2
      %s326 = scalar_select %p325, %s15, 2
      %s327 = smul.addr %s326, 8
      %s328 = scalar_lea.vmem %s3, %s327
      // Predicated region
      $region29: #{multilabel_sparsemax_loss.1} parent=27 // pred_check
        %p329 = pneg %p85
      $region30: #{multilabel_sparsemax_loss.1} parent=27 // pred_check_branch
        %331 = sbr.rel (%p329) target = $region32
      $region31: #{multilabel_sparsemax_loss.1} parent=27 // pred_region
        _
      $region32: #{multilabel_sparsemax_loss.1} parent=27 // pred_fallthru
        _
      // Predicated region
      $region33: #{multilabel_sparsemax_loss.1} parent=27 // pred_check
        %p332 = pneg %p111
      $region34: #{multilabel_sparsemax_loss.1} parent=27 // pred_check_branch
        %334 = sbr.rel (%p332) target = $region36
      $region35: #{multilabel_sparsemax_loss.1} parent=27 // pred_region
        _
      $region36: #{multilabel_sparsemax_loss.1} parent=27 // pred_fallthru
        _
    $region28: #{multilabel_sparsemax_loss.1} parent=5 // pred_fallthru
      _
    %p335 = scmp.le.s32.totalorder 2, %s10
    // Predicated region
    $region37: #{multilabel_sparsemax_loss.1} parent=5 // pred_check
      %p336 = pneg %p335
    $region38: #{multilabel_sparsemax_loss.1} parent=5 // pred_check_branch
      %338 = sbr.rel (%p336) target = $region40
    $region39: #{multilabel_sparsemax_loss.1} parent=5 // pred_region
      %s339 = ssub.s32 %s10, 2
      // Predicated region
      $region41: #{multilabel_sparsemax_loss.1} parent=39 // pred_check
        %p340 = pneg %p91
      $region42: #{multilabel_sparsemax_loss.1} parent=39 // pred_check_branch
        %342 = sbr.rel (%p340) target = $region44
      $region43: #{multilabel_sparsemax_loss.1} parent=39 // pred_region
        %p343 = scmp.lt.s32.totalorder %s16, 2
        %s344 = scalar_select %p343, %s16, 2
        %s345 = smul.addr %s344, 8
        %s346 = scalar_lea.vmem %s2, %s345
      $region44: #{multilabel_sparsemax_loss.1} parent=39 // pred_fallthru
        _
      // Predicated region
      $region45: #{multilabel_sparsemax_loss.1} parent=39 // pred_check
        %p347 = pneg %p117
      $region46: #{multilabel_sparsemax_loss.1} parent=39 // pred_check_branch
        %349 = sbr.rel (%p347) target = $region48
      $region47: #{multilabel_sparsemax_loss.1} parent=39 // pred_region
        %p350 = scmp.lt.s32.totalorder %s16, 2
        %s351 = scalar_select %p350, %s16, 2
        %s352 = smul.addr %s351, 8
        %s353 = scalar_lea.vmem %s3, %s352
      $region48: #{multilabel_sparsemax_loss.1} parent=39 // pred_fallthru
        _
    $region40: #{multilabel_sparsemax_loss.1} parent=5 // pred_fallthru
      _
  $region6: #{multilabel_sparsemax_loss.1} parent=0 // loop_footer
    %s14 = sadd.s32 1, %s10
  $region7: #{multilabel_sparsemax_loss.1} parent=0 // loop_footer_branch
    %9 = sbr.rel target = $region3
  $region8: #{multilabel_sparsemax_loss.1} parent=0 // loop_exit
    _

</llo_original>
